<compile_context>
chip_gen: v6e
topology: v6e:2x2x1
jax: 0.10.0
libtpu: 0.0.40
codegen_flags: <defaults>
</compile_context>

<pallas_src>
import functools

import jax
import jax.numpy as jnp
from jax.experimental import pallas as pl
from jax.experimental.pallas import tpu as pltpu


def _round_up(x, m):
    return (x + m - 1) // m * m


def _cdiv(a, b):
    return (a + b - 1) // b


def _choose_class_tile(n_classes, e_pad, n_sub, w_itemsize, *, tile_b,
                       max_tile_c, vmem_budget_bytes):
    """Largest lane-dense class tile (multiple of 128) whose per-grid-step
    working set fits the VMEM budget.  The budget covers the FULL working set:
      2 x (S, E, tile_c) weight-stream buffers   (double buffered over j)
      2 x (tile_b, tile_c) f32 exp output buffers
      2 x (tile_b, E) x buffers + small scalar blocks.
    """
    tile_c = max(128, min(_round_up(max_tile_c, 128), _round_up(n_classes, 128)))
    fixed = 2 * tile_b * e_pad * w_itemsize + 64 * tile_b + (1 << 20)

    def need(tc):
        return fixed + 2 * n_sub * e_pad * tc * w_itemsize + 2 * tile_b * tc * 4

    while tile_c > 128 and need(tile_c) > vmem_budget_bytes:
        tile_c -= 128
    return tile_c


def prepare_arcface_weights(w, *, use_bf16=False, max_batch_tile=256,
                            max_class_tile=2048,
                            vmem_budget_bytes=48 * 1024 * 1024):
    """One-time (per weight update) prep for the ArcFace Pallas kernel.

    w: (E, C, S) float32 parameter as in the torch module.

    * F.normalize(w, dim=0) (eps=1e-12, matching torch).
    * (S, E, C) layout so the kernel does (TB, E) x (E, TC) MXU matmuls.
    * E padded to a sublane-aligned multiple (8 f32 / 16 bf16); classes padded
      to a lane-dense multiple of the chosen class tile.
    * use_bf16=True halves the streamed weight bytes and is recommended on ALL
      TPU generations (v5e/v6e/v7x): the kernel is weight-HBM-stream bound and
      every MXU takes bf16 natively; post-matmul math stays f32.
    * vmem_budget_bytes defaults to a v7x-safe 48 MiB (64 MiB physical VMEM);
      on v5e/v6e (128 MiB VMEM) raise it to ~96 MiB for bigger class tiles.
      max_batch_tile should match the value passed to arcface_forward.

    Returns (wt, n_classes, n_embeddings, tile_c), wt of shape (S, E_pad, C_pad).
    """
    E, C, S = w.shape
    dtype = jnp.bfloat16 if use_bf16 else jnp.float32
    itemsize = jnp.dtype(dtype).itemsize
    e_pad = _round_up(E, 16 if use_bf16 else 8)

    tile_c = _choose_class_tile(C, e_pad, S, itemsize, tile_b=max_batch_tile,
                                max_tile_c=max_class_tile,
                                vmem_budget_bytes=vmem_budget_bytes)
    c_pad = _round_up(C, tile_c)

    w = w.astype(jnp.float32)
    norm = jnp.sqrt(jnp.sum(w * w, axis=0, keepdims=True))      # (1, C, S)
    w_n = w / jnp.maximum(norm, 1e-12)                          # torch F.normalize eps
    wt = jnp.transpose(w_n, (2, 0, 1))                          # (S, E, C)
    wt = jnp.pad(wt, ((0, 0), (0, e_pad - E), (0, c_pad - C)))
    return wt.astype(dtype), C, E, tile_c


def _arcface_exp_kernel(x_ref, side_ref, w_ref, e_ref, denom_ref, *,
                        n_sub, n_valid_classes, tile_c, scale, mask_padding):
    """Pass 1.  Grid = (batch tiles [parallel], class tiles [arbitrary]).

    Per class tile: S lane-wide MXU matmuls (N = tile_c >= 128), subclass max,
    margin on the target column only, and the unnormalised softmax numerator
    exp(logit - scale) written to a class-tiled, lane-dense output block.
    `scale` is a valid static row max because cos(theta + m) <= 1, so every
    logit <= scale (no cross-lane max reduce, no running max).  The per-row
    denominator accumulates into a tiny resident (tile_b, 1) output block.
    """
    j = pl.program_id(1)

    x = x_ref[...]                                              # (TB, E_pad)
    cos = jnp.dot(x, w_ref[0], preferred_element_type=jnp.float32)
    for s in range(1, n_sub):                                   # static, small S
        cos = jnp.maximum(
            cos, jnp.dot(x, w_ref[s], preferred_element_type=jnp.float32))
    cos = jnp.clip(cos, -1.0, 1.0)                              # (TB, TC) f32

    side = side_ref[...]                                        # (TB, 4) f32
    lbl = side[:, 0:1].astype(jnp.int32)                        # (TB, 1)
    cos_m = side[:, 1:2]
    sin_m = side[:, 2:3]

    # Margin only where column == target label (one-hot target semantics):
    #   cos(theta + m) = c*cos(m) - sin(theta)*sin(m)   (exact identity)
    col = j * tile_c + jax.lax.broadcasted_iota(jnp.int32, cos.shape, 1)
    is_target = col == lbl
    sin_theta = jnp.sqrt(jnp.maximum(1.0 - cos * cos, 0.0))
    with_margin = cos * cos_m - sin_theta * sin_m
    logits = jnp.where(is_target, with_margin, cos) * scale

    p = jnp.exp(logits - scale)                                 # in (0, 1]
    if mask_padding:
        # Emitted only when class padding exists at all (static check); padded
        # columns must not contribute to the denominator.
        p = jnp.where(col < n_valid_classes, p, 0.0)
    e_ref[...] = p                                              # lane-dense store

    @pl.when(j == 0)
    def _init():
        denom_ref[...] = jnp.zeros_like(denom_ref)

    denom_ref[...] += jnp.sum(p, axis=1, keepdims=True)


def _arcface_rescale_kernel(e_ref, denom_ref, out_ref):
    """Pass 2: out = e / denom (pure elementwise, bandwidth bound)."""
    # Guard against a fully-underflowed row (only possible if every class had
    # cos(theta) ~ -1 simultaneously); keeps the output finite.
    d = jnp.maximum(denom_ref[...], 1e-37)
    inv = pl.reciprocal(d, approx=True)                         # EUP slot
    inv = inv * (2.0 - d * inv)                                 # 1 Newton step -> f32 accuracy
    out_ref[...] = e_ref[...] * inv


def arcface_forward(embedding_batch, prepared_w, target_batch, *,
                    margin=0.5, scale_factor=64.0, max_batch_tile=256):
    """embedding_batch: (B, E); prepared_w: prepare_arcface_weights(...) output;
    target_batch: (B, C) one-hot targets (standard ArcFace usage).

    max_batch_tile: weights are re-streamed from HBM once per batch tile, so
    bigger tiles raise arithmetic intensity.  256 is a good default everywhere;
    v6e can go to 384-512 when the batch is large enough.
    """
    wt, n_classes, n_emb, tile_c = prepared_w
    S, e_pad, c_pad = wt.shape
    B, E = embedding_batch.shape
    assert E == n_emb
    assert target_batch.shape == (B, n_classes)
    # exp(logits - scale) relies on logits being bounded by +-scale and on
    # exp(-2*scale) staying far from the f32 exp range limit (~88).
    assert 0.0 < scale_factor <= 80.0, "scale_factor must stay well below f32 exp range"

    # Batch tiling: tiles as large as max_batch_tile, but >= 2 programs on the
    # "parallel" axis whenever the batch allows it (v7x has 2 TensorCores).
    b8 = _round_up(B, 8)
    n_bt = max(_cdiv(b8, max_batch_tile), 2 if b8 >= 16 else 1)
    tile_b = _round_up(_cdiv(b8, n_bt), 8)
    b_pad = tile_b * n_bt

    x = embedding_batch.astype(wt.dtype)        # bf16 MXU operands iff weights are bf16
    if e_pad != E:
        x = jnp.pad(x, ((0, 0), (0, e_pad - E)))

    # TODO(synk): the in-kernel label mask assumes <= 1 nonzero entry per target
    # row (standard one-hot ArcFace); arbitrary dense per-class margins would
    # need the full (B, C) margin table again.
    tf = target_batch.astype(jnp.float32)
    labels = jnp.argmax(tf, axis=1).astype(jnp.float32)[:, None]          # (B, 1)
    row_margin = jnp.float32(margin) * jnp.max(tf, axis=1)[:, None]       # (B, 1)
    side = jnp.concatenate(
        [labels, jnp.cos(row_margin), jnp.sin(row_margin),
         jnp.zeros_like(labels)], axis=1)                                  # (B, 4) f32

    if b_pad != B:
        x = jnp.pad(x, ((0, b_pad - B), (0, 0)))
        side = jnp.pad(side, ((0, b_pad - B), (0, 0)))   # padded rows sliced off later

    grid = (b_pad // tile_b, c_pad // tile_c)
    itemsize = jnp.dtype(wt.dtype).itemsize

    work_bytes = (2 * S * e_pad * tile_c * itemsize      # weight stream (double buffered)
                  + 2 * tile_b * tile_c * 4              # exp output blocks
                  + 2 * tile_b * e_pad * itemsize        # x blocks
                  + 2 * tile_b * (16 + 4)                # side + denom blocks
                  + (1 << 20))
    vmem_limit = int(min(max(work_bytes * 5 // 4, 32 << 20), 127 << 20))

    cost = pl.CostEstimate(
        flops=2 * b_pad * e_pad * c_pad * S,
        transcendentals=2 * b_pad * c_pad,               # sqrt + exp per element
        bytes_accessed=(wt.size * itemsize * grid[0]     # weights re-streamed per batch tile
                        + x.size * itemsize + side.size * 4
                        + b_pad * c_pad * 4 + b_pad * 4))

    kernel = functools.partial(
        _arcface_exp_kernel, n_sub=S, n_valid_classes=n_classes,
        tile_c=tile_c, scale=float(scale_factor),
        mask_padding=(c_pad != n_classes))

    # TODO(synk): sweep pipeline_mode=pl.Buffered(3) on the weight BlockSpec for
    # small-E configs on v5e/v6e (more in-flight weight DMA) once profiled.
    e, denom = pl.pallas_call(
        kernel,
        out_shape=(jax.ShapeDtypeStruct((b_pad, c_pad), jnp.float32),
                   jax.ShapeDtypeStruct((b_pad, 1), jnp.float32)),
        grid_spec=pltpu.PrefetchScalarGridSpec(
            num_scalar_prefetch=0,
            grid=grid,
            in_specs=[
                pl.BlockSpec((tile_b, e_pad), lambda i, j: (i, 0)),        # x (resident over j)
                pl.BlockSpec((tile_b, 4), lambda i, j: (i, 0)),            # label/cos_m/sin_m
                pl.BlockSpec((S, e_pad, tile_c), lambda i, j: (0, 0, j)),  # weights stream over j
            ],
            out_specs=(
                pl.BlockSpec((tile_b, tile_c), lambda i, j: (i, j)),       # exp(logit - scale)
                pl.BlockSpec((tile_b, 1), lambda i, j: (i, 0)),            # row denominator
            ),
        ),
        compiler_params=pltpu.CompilerParams(
            dimension_semantics=("parallel", "arbitrary"),
            vmem_limit_bytes=vmem_limit),
        cost_estimate=cost,
    )(x, side, wt)

    # Pass 2: normalize.  Pure elementwise; use the biggest class tile that
    # still keeps the working set small (fewer ~0.35us grid steps).
    tile_c_r = c_pad if 6 * tile_b * c_pad * 4 <= (24 << 20) else tile_c
    grid_r = (b_pad // tile_b, c_pad // tile_c_r)

    # TODO(synk): a bf16 output dtype would halve this pass's HBM write if
    # downstream consumers tolerate bf16 probabilities.
    probs = pl.pallas_call(
        _arcface_rescale_kernel,
        out_shape=jax.ShapeDtypeStruct((b_pad, c_pad), jnp.float32),
        grid_spec=pltpu.PrefetchScalarGridSpec(
            num_scalar_prefetch=0,
            grid=grid_r,
            in_specs=[
                pl.BlockSpec((tile_b, tile_c_r), lambda i, j: (i, j)),
                pl.BlockSpec((tile_b, 1), lambda i, j: (i, 0)),
            ],
            out_specs=pl.BlockSpec((tile_b, tile_c_r), lambda i, j: (i, j)),
        ),
        compiler_params=pltpu.CompilerParams(
            dimension_semantics=("parallel", "parallel"),
            vmem_limit_bytes=int(min(max(6 * tile_b * tile_c_r * 4, 32 << 20), 127 << 20))),
        cost_estimate=pl.CostEstimate(
            flops=4 * b_pad * c_pad,
            transcendentals=0,
            bytes_accessed=2 * b_pad * c_pad * 4 + b_pad * 4),
    )(e, denom)

    return probs[:B, :n_classes]


if __name__ == "__main__":
    key = jax.random.PRNGKey(0)
    B, E, C, S = 8, 32, 16, 2          # batch, n_embeddings, n_identities, n_subclasses
    MARGIN, SCALE = 0.5, 64.0

    k_w, k_x, k_t = jax.random.split(key, 3)
    # Deterministic xavier_uniform-style init for w (E, C, S):
    # torch fan_in = C*S, fan_out = E*S, bound = sqrt(6 / (fan_in + fan_out))
    bound = (6.0 / (C * S + E * S)) ** 0.5
    w = jax.random.uniform(k_w, (E, C, S), jnp.float32, -bound, bound)
    x = 0.1 * jax.random.normal(k_x, (B, E), jnp.float32)
    labels = jax.random.randint(k_t, (B,), 0, C)
    target = jax.nn.one_hot(labels, C, dtype=jnp.float32)

    # Pure-JAX reference reproducing the torch forward verbatim.
    w_n = w / jnp.maximum(jnp.linalg.norm(w, axis=0, keepdims=True), 1e-12)
    cs = jnp.clip(jnp.einsum("be,ecs->bcs", x, w_n), -1.0, 1.0)
    ref = jax.nn.softmax(
        jnp.cos(jnp.arccos(jnp.max(cs, axis=2)) + target * MARGIN) * SCALE, axis=1)

    # --- f32 MXU operands: tight check ---
    prep32 = prepare_arcface_weights(w, use_bf16=False)
    out32 = jax.block_until_ready(
        arcface_forward(x, prep32, target, margin=MARGIN, scale_factor=SCALE))
    assert out32.shape == (B, C) and out32.dtype == jnp.float32
    assert bool(jnp.allclose(out32, ref, atol=1e-4, rtol=1e-4)), (
        "f32 max abs err = %e" % float(jnp.max(jnp.abs(out32 - ref))))

    # --- bf16 MXU operands (recommended on all generations: weight-stream bound) ---
    # Compare against a reference with bf16-rounded matmul inputs: the scale
    # factor of 64 amplifies bf16 input rounding to ~1e-2 on probabilities, so
    # the f32 reference is not the right yardstick for this path.
    prep16 = prepare_arcface_weights(w, use_bf16=True)
    out16 = jax.block_until_ready(
        arcface_forward(x, prep16, target, margin=MARGIN, scale_factor=SCALE))
    x16 = x.astype(jnp.bfloat16).astype(jnp.float32)
    wn16 = w_n.astype(jnp.bfloat16).astype(jnp.float32)
    cs16 = jnp.clip(jnp.einsum("be,ecs->bcs", x16, wn16), -1.0, 1.0)
    ref16 = jax.nn.softmax(
        jnp.cos(jnp.arccos(jnp.max(cs16, axis=2)) + target * MARGIN) * SCALE, axis=1)
    assert out16.shape == (B, C)
    assert bool(jnp.allclose(out16, ref16, atol=2e-3, rtol=2e-3)), (
        "bf16 max abs err = %e" % float(jnp.max(jnp.abs(out16 - ref16))))

    print("KERNEL_OK")
</pallas_src>

<mosaic_0001>
module attributes {stable_mosaic.version = 11 : i64} {
  func.func @_arcface_exp_kernel(%arg0: i32, %arg1: i32, %arg2: memref<8x32xf32, #tpu.memory_space<vmem>>, %arg3: memref<8x4xf32, #tpu.memory_space<vmem>>, %arg4: memref<2x32x128xf32, #tpu.memory_space<vmem>>, %arg5: memref<8x128xf32, #tpu.memory_space<vmem>>, %arg6: memref<8x1xf32, #tpu.memory_space<vmem>>) attributes {dimension_semantics = [#tpu.dimension_semantics<parallel>, #tpu.dimension_semantics<arbitrary>], iteration_bounds = array<i64: 1, 1>, scalar_prefetch = 0 : i64, scratch_operands = 0 : i64, tpu.core_type = #tpu.core_type<tc>, window_params = [{transform_indices = @transform_0, window_bounds = array<i64: 8, 32>}, {transform_indices = @transform_1, window_bounds = array<i64: 8, 4>}, {transform_indices = @transform_2, window_bounds = array<i64: 2, 32, 128>}, {transform_indices = @transform_3, window_bounds = array<i64: 8, 128>}, {transform_indices = @transform_4, window_bounds = array<i64: 8, 1>}]} {
    %c0 = arith.constant 0 : index
    %c0_0 = arith.constant 0 : index
    %0 = vector.load %arg2[%c0, %c0_0] : memref<8x32xf32, #tpu.memory_space<vmem>>, vector<8x32xf32>
    %c0_1 = arith.constant 0 : index
    %c0_2 = arith.constant 0 : index
    %c0_3 = arith.constant 0 : index
    %1 = vector.load %arg4[%c0_1, %c0_2, %c0_3] : memref<2x32x128xf32, #tpu.memory_space<vmem>>, vector<1x32x128xf32>
    %2 = vector.shape_cast %1 : vector<1x32x128xf32> to vector<32x128xf32>
    %cst = arith.constant dense<0.000000e+00> : vector<8x128xf32>
    %3 = tpu.matmul %0, %2, %cst {dimension_numbers = #tpu.dot_dimension_numbers<[1], [0], [0], [1], [0, 0, 1, 1], [], []>} : vector<8x32xf32>, vector<32x128xf32>, vector<8x128xf32> -> vector<8x128xf32>
    %c1 = arith.constant 1 : index
    %c0_4 = arith.constant 0 : index
    %c0_5 = arith.constant 0 : index
    %4 = vector.load %arg4[%c1, %c0_4, %c0_5] : memref<2x32x128xf32, #tpu.memory_space<vmem>>, vector<1x32x128xf32>
    %5 = vector.shape_cast %4 : vector<1x32x128xf32> to vector<32x128xf32>
    %cst_6 = arith.constant dense<0.000000e+00> : vector<8x128xf32>
    %6 = tpu.matmul %0, %5, %cst_6 {dimension_numbers = #tpu.dot_dimension_numbers<[1], [0], [0], [1], [0, 0, 1, 1], [], []>} : vector<8x32xf32>, vector<32x128xf32>, vector<8x128xf32> -> vector<8x128xf32>
    %7 = arith.maximumf %3, %6 : vector<8x128xf32>
    %cst_7 = arith.constant -1.000000e+00 : f32
    %cst_8 = arith.constant 1.000000e+00 : f32
    %8 = vector.broadcast %cst_7 : f32 to vector<8x128xf32>
    %9 = arith.maximumf %8, %7 : vector<8x128xf32>
    %10 = vector.broadcast %cst_8 : f32 to vector<8x128xf32>
    %11 = arith.minimumf %10, %9 : vector<8x128xf32>
    %c0_9 = arith.constant 0 : index
    %c0_10 = arith.constant 0 : index
    %12 = vector.load %arg3[%c0_9, %c0_10] : memref<8x4xf32, #tpu.memory_space<vmem>>, vector<8x4xf32>
    %13 = vector.extract_strided_slice %12 {offsets = [0, 0], sizes = [8, 1], strides = [1, 1]} : vector<8x4xf32> to vector<8x1xf32>
    %14 = arith.fptosi %13 : vector<8x1xf32> to vector<8x1xi32>
    %15 = vector.extract_strided_slice %12 {offsets = [0, 1], sizes = [8, 1], strides = [1, 1]} : vector<8x4xf32> to vector<8x1xf32>
    %16 = vector.extract_strided_slice %12 {offsets = [0, 2], sizes = [8, 1], strides = [1, 1]} : vector<8x4xf32> to vector<8x1xf32>
    %c128_i32 = arith.constant 128 : i32
    %17 = arith.muli %arg1, %c128_i32 : i32
    %18 = tpu.iota {dimensions = array<i32: 1>} : vector<8x128xi32>
    %19 = vector.broadcast %17 : i32 to vector<8x128xi32>
    %20 = arith.addi %19, %18 : vector<8x128xi32>
    %21 = vector.broadcast %14 : vector<8x1xi32> to vector<8x128xi32>
    %22 = arith.cmpi eq, %20, %21 : vector<8x128xi32>
    %23 = arith.mulf %11, %11 : vector<8x128xf32>
    %cst_11 = arith.constant 1.000000e+00 : f32
    %24 = vector.broadcast %cst_11 : f32 to vector<8x128xf32>
    %25 = arith.subf %24, %23 : vector<8x128xf32>
    %cst_12 = arith.constant 0.000000e+00 : f32
    %26 = vector.broadcast %cst_12 : f32 to vector<8x128xf32>
    %27 = arith.maximumf %25, %26 : vector<8x128xf32>
    %28 = math.sqrt %27 : vector<8x128xf32>
    %29 = vector.broadcast %15 : vector<8x1xf32> to vector<8x128xf32>
    %30 = arith.mulf %11, %29 : vector<8x128xf32>
    %31 = vector.broadcast %16 : vector<8x1xf32> to vector<8x128xf32>
    %32 = arith.mulf %28, %31 : vector<8x128xf32>
    %33 = arith.subf %30, %32 : vector<8x128xf32>
    %34 = arith.select %22, %33, %11 : vector<8x128xi1>, vector<8x128xf32>
    %cst_13 = arith.constant 6.400000e+01 : f32
    %35 = vector.broadcast %cst_13 : f32 to vector<8x128xf32>
    %36 = arith.mulf %34, %35 : vector<8x128xf32>
    %cst_14 = arith.constant 6.400000e+01 : f32
    %37 = vector.broadcast %cst_14 : f32 to vector<8x128xf32>
    %38 = arith.subf %36, %37 : vector<8x128xf32>
    %39 = math.exp %38 : vector<8x128xf32>
    %c16_i32 = arith.constant 16 : i32
    %40 = vector.broadcast %c16_i32 : i32 to vector<8x128xi32>
    %41 = arith.cmpi slt, %20, %40 : vector<8x128xi32>
    %cst_15 = arith.constant 0.000000e+00 : f32
    %42 = vector.broadcast %cst_15 : f32 to vector<8x128xf32>
    %43 = arith.select %41, %39, %42 : vector<8x128xi1>, vector<8x128xf32>
    %c0_16 = arith.constant 0 : index
    %c0_17 = arith.constant 0 : index
    %44 = vector.load %arg5[%c0_16, %c0_17] : memref<8x128xf32, #tpu.memory_space<vmem>>, vector<8x128xf32>
    tpu.vector_store %arg5[%c0_16, %c0_17], %43 {strides = array<i32>} : memref<8x128xf32, #tpu.memory_space<vmem>>, vector<8x128xf32>,
    %c0_i32 = arith.constant 0 : i32
    %45 = arith.cmpi eq, %arg1, %c0_i32 : i32
    %46 = arith.extui %45 : i1 to i32
    %c0_i32_18 = arith.constant 0 : i32
    %47 = arith.cmpi ne, %46, %c0_i32_18 : i32
    scf.if %47 {
      %cst_24 = arith.constant 0.000000e+00 : f32
      %53 = vector.broadcast %cst_24 : f32 to vector<8x1xf32>
      %c0_25 = arith.constant 0 : index
      %c0_26 = arith.constant 0 : index
      %54 = vector.load %arg6[%c0_25, %c0_26] : memref<8x1xf32, #tpu.memory_space<vmem>>, vector<8x1xf32>
      tpu.vector_store %arg6[%c0_25, %c0_26], %53 {strides = array<i32>} : memref<8x1xf32, #tpu.memory_space<vmem>>, vector<8x1xf32>,
    } else {
    }
    %c0_19 = arith.constant 0 : index
    %c0_20 = arith.constant 0 : index
    %48 = vector.load %arg6[%c0_19, %c0_20] : memref<8x1xf32, #tpu.memory_space<vmem>>, vector<8x1xf32>
    %cst_21 = arith.constant dense<0.000000e+00> : vector<8xf32>
    %49 = vector.multi_reduction <add>, %43, %cst_21 [1] : vector<8x128xf32> to vector<8xf32>
    %50 = vector.shape_cast %49 : vector<8xf32> to vector<8x1xf32>
    %51 = arith.addf %48, %50 : vector<8x1xf32>
    %c0_22 = arith.constant 0 : index
    %c0_23 = arith.constant 0 : index
    %52 = vector.load %arg6[%c0_22, %c0_23] : memref<8x1xf32, #tpu.memory_space<vmem>>, vector<8x1xf32>
    tpu.vector_store %arg6[%c0_22, %c0_23], %51 {strides = array<i32>} : memref<8x1xf32, #tpu.memory_space<vmem>>, vector<8x1xf32>,
    return
  }
  func.func @transform_0(%arg0: i32, %arg1: i32) -> (i32, i32) {
    %c0_i32 = arith.constant 0 : i32
    %c0_i32_0 = arith.constant 0 : i32
    return %arg0, %c0_i32 : i32, i32
  }
  func.func @transform_1(%arg0: i32, %arg1: i32) -> (i32, i32) {
    %c0_i32 = arith.constant 0 : i32
    %c0_i32_0 = arith.constant 0 : i32
    return %arg0, %c0_i32 : i32, i32
  }
  func.func @transform_2(%arg0: i32, %arg1: i32) -> (i32, i32, i32) {
    %c0_i32 = arith.constant 0 : i32
    %c0_i32_0 = arith.constant 0 : i32
    %c0_i32_1 = arith.constant 0 : i32
    return %c0_i32, %c0_i32_0, %arg1 : i32, i32, i32
  }
  func.func @transform_3(%arg0: i32, %arg1: i32) -> (i32, i32) {
    %c0_i32 = arith.constant 0 : i32
    return %arg0, %arg1 : i32, i32
  }
  func.func @transform_4(%arg0: i32, %arg1: i32) -> (i32, i32) {
    %c0_i32 = arith.constant 0 : i32
    %c0_i32_0 = arith.constant 0 : i32
    return %arg0, %c0_i32 : i32, i32
  }
}

</mosaic_0001>

<llo_original>
// kernel: tpu_custom_call.1
$region0: #{tpu_custom_call.1}
  #allocation0 [shape = 'u32[]', space=smem, size = 0x4, offset = 0x4, fixed_abs, tag = 'smem constant byte address 0x4 - core index']
  #allocation1 [shape = 'u32[144,128]{1,0:T(1,128)}', space=vmem, size = 0x12000, scoped, tag = 'internal scratch']
  %s0 = inlined_call_operand.vmem [shape: f32[8,32], index: 0, kind: input, shape index: {}]
  %s1 = inlined_call_operand.vmem [shape: f32[8,4], index: 1, kind: input, shape index: {}]
  %s2 = inlined_call_operand.hbm [shape: f32[2,32,128], index: 2, kind: input, shape index: {}]
  %s3 = inlined_call_operand.hbm [shape: f32[8,128], index: 3, kind: output, shape index: {0}]
  %s4 = inlined_call_operand.vmem [shape: f32[8,1], index: 4, kind: output, shape index: {1}]
  %5 = xla_tuple %s3, %s4
  %s6 = sld [smem:[#allocation0]]
  $region38: #{tpu_custom_call.1} parent=0
    _
  %s8 = ssub.s32 1, %s6
  %s9 = scalar_select 0, %s8, %s6
  $region1: #{tpu_custom_call.1} parent=0
    #allocation2 [shape = 'u8[32768]{0}', space=vmem, size = 0x8000, scoped, tag = 'input window, operand 2, single buffered']
    #allocation3 [shape = 's32[1]{0}', space=sflag, size = 0x4, scoped, tag = 'scoped memory for tpu_custom_call.1']
    #allocation4 [shape = 's32[1]{0}', space=sflag, size = 0x4, scoped, tag = 'scoped memory for tpu_custom_call.1']
    #allocation5 [shape = 'u8[4096]{0}', space=vmem, size = 0x1000, scoped, tag = 'output window, operand 0, single buffered']
    %10 = vsyncpa [#allocation3], 0
    %11 = vsyncpa [#allocation4], 0
    // Predicated region
    $region2: #{tpu_custom_call.1} parent=1 // pred_check
      _
    $region3: #{tpu_custom_call.1} parent=1 // pred_check_branch
      %13 = sbr.rel (0) target = $region5
    $region4: #{tpu_custom_call.1} parent=1 // pred_region
      _
    $region5: #{tpu_custom_call.1} parent=1 // pred_fallthru
      _
    // Predicated region
    $region6: #{tpu_custom_call.1} parent=1 // pred_check
      _
    $region7: #{tpu_custom_call.1} parent=1 // pred_check_branch
      %15 = sbr.rel (0) target = $region9
    $region8: #{tpu_custom_call.1} parent=1 // pred_region
      _
    $region9: #{tpu_custom_call.1} parent=1 // pred_fallthru
      _
    // Predicated region
    $region10: #{tpu_custom_call.1} parent=1 // pred_check
      _
    $region11: #{tpu_custom_call.1} parent=1 // pred_check_branch
      %17 = sbr.rel (0) target = $region13
    $region12: #{tpu_custom_call.1} parent=1 // pred_region
      %s19 = ssub.s32 1024, 1024
      %20 = vsyncadd [#allocation3], %s19
      %s21 = sshll.u32 [#allocation2], 4
      %s22 = int_to_ptr.vmem [resolvable:$true] %s21
      %27 = dma.hbm_to_vmem [thread:$0]  %s2, 1024, %s22, [#allocation3], 128, 128, 8
    $region13: #{tpu_custom_call.1} parent=1 // pred_fallthru
      _
    // Predicated region
    $region14: #{tpu_custom_call.1} parent=1 // pred_check
      _
    $region15: #{tpu_custom_call.1} parent=1 // pred_check_branch
      %29 = sbr.rel (0) target = $region17
    $region16: #{tpu_custom_call.1} parent=1 // pred_region
      %30 = dma.done [#allocation3], 1024
    $region17: #{tpu_custom_call.1} parent=1 // pred_fallthru
      _
    %v31 = vld [vmem:[%s0] sm:$0xff]
    %v32 = vld [vmem:[#allocation2] sm:$0xff]
    %v33 = vld [vmem:[#allocation2 + $0x8] sm:$0xff]
    %v34 = vld [vmem:[#allocation2 + $0x10] sm:$0xff]
    %v35 = vld [vmem:[#allocation2 + $0x18] sm:$0xff]
    %vm36 = vcmask 261120
    %v38 = vsel %vm36, %v31, 0
    %40 = vmatprep.subr.mxu0 0.0
    %41 = vmatpush1.msra.mxu0 0.0
    %42 = vmatprep.subr.mxu0 0.0
    %43 = vmatpush1.msra.mxu0 0.0
    %44 = vmatprep.subr.mxu0 0.0
    %45 = vmatpush1.msra.mxu0 0.0
    %46 = vmatprep.subr.mxu0 0.0
    %47 = vmatpush1.msra.mxu0 0.0
    %48 = vmatprep.subr.mxu0 0.0
    %49 = vmatpush1.msra.mxu0 0.0
    %50 = vmatprep.subr.mxu0 0.0
    %51 = vmatpush1.msra.mxu0 0.0
    %52 = vmatprep.subr.mxu0 0.0
    %53 = vmatpush1.msra.mxu0 0.0
    %54 = vmatprep.subr.mxu0 0.0
    %55 = vmatpush1.msra.mxu0 0.0
    %56 = vmatprep.subr.mxu0 0.0
    %57 = vmatpush1.msra.mxu0 0.0
    %58 = vmatprep.subr.mxu0 0.0
    %59 = vmatpush1.msra.mxu0 0.0
    %60 = vmatprep.subr.mxu0 0.0
    %61 = vmatpush1.msra.mxu0 0.0
    %62 = vmatprep.subr.mxu0 0.0
    %63 = vmatpush1.msra.mxu0 0.0
    %64 = vmatprep.subr.mxu0 0.0
    %65 = vmatpush1.msra.mxu0 %v35
    %66 = vmatprep.subr.mxu0 0.0
    %67 = vmatpush1.msra.mxu0 %v34
    %68 = vmatprep.subr.mxu0 0.0
    %69 = vmatpush1.msra.mxu0 %v33
    %70 = vmatprep.subr.mxu0 0.0
    %71 = vmatpush1.msra.mxu0 %v32
    %72 = vmatprep.subr.mxu0 0.0
    %73 = vmatpush2.msra.mxu0 0.0
    %74 = vmatprep.subr.mxu0 0.0
    %75 = vmatpush2.msra.mxu0 0.0
    %76 = vmatprep.subr.mxu0 0.0
    %77 = vmatpush2.msra.mxu0 0.0
    %78 = vmatprep.subr.mxu0 0.0
    %79 = vmatpush2.msra.mxu0 0.0
    %80 = vmatprep.subr.mxu0 0.0
    %81 = vmatpush2.msra.mxu0 0.0
    %82 = vmatprep.subr.mxu0 0.0
    %83 = vmatpush2.msra.mxu0 0.0
    %84 = vmatprep.subr.mxu0 0.0
    %85 = vmatpush2.msra.mxu0 0.0
    %86 = vmatprep.subr.mxu0 0.0
    %87 = vmatpush2.msra.mxu0 0.0
    %88 = vmatprep.subr.mxu0 0.0
    %89 = vmatpush2.msra.mxu0 0.0
    %90 = vmatprep.subr.mxu0 0.0
    %91 = vmatpush2.msra.mxu0 0.0
    %92 = vmatprep.subr.mxu0 0.0
    %93 = vmatpush2.msra.mxu0 0.0
    %94 = vmatprep.subr.mxu0 0.0
    %95 = vmatpush2.msra.mxu0 0.0
    %96 = vmatprep.subr.mxu0 0.0
    %97 = vmatpush2.msra.mxu0 0.0
    %98 = vmatprep.subr.mxu0 0.0
    %99 = vmatpush2.msra.mxu0 0.0
    %100 = vmatprep.subr.mxu0 0.0
    %101 = vmatpush2.msra.mxu0 0.0
    %102 = vmatprep.subr.mxu0 0.0
    %103 = vmatpush2.msra.mxu0 0.0
    %104 = vmatprep.mubr.f32.mxu0 0.0
    %105 = vmatmul.mubr.f32.gmra.mxu0 %v38
    %v106 = vpop.f32.mrf.mxu0
    %v107 = vadd.f32 0.0, %v106
    %v108 = vpop.f32.mrf.mxu0
    %109 = vdwg.mxu0
    %s110 = scalar_lea.vmem [#allocation2], 32
    %v111 = vld [vmem:[%s110] sm:$0xff]
    %v112 = vld [vmem:[%s110 + $0x8] sm:$0xff]
    %v113 = vld [vmem:[%s110 + $0x10] sm:$0xff]
    %v114 = vld [vmem:[%s110 + $0x18] sm:$0xff]
    %115 = vmatprep.subr.mxu0 0.0
    %116 = vmatpush1.msra.mxu0 0.0
    %117 = vmatprep.subr.mxu0 0.0
    %118 = vmatpush1.msra.mxu0 0.0
    %119 = vmatprep.subr.mxu0 0.0
    %120 = vmatpush1.msra.mxu0 0.0
    %121 = vmatprep.subr.mxu0 0.0
    %122 = vmatpush1.msra.mxu0 0.0
    %123 = vmatprep.subr.mxu0 0.0
    %124 = vmatpush1.msra.mxu0 0.0
    %125 = vmatprep.subr.mxu0 0.0
    %126 = vmatpush1.msra.mxu0 0.0
    %127 = vmatprep.subr.mxu0 0.0
    %128 = vmatpush1.msra.mxu0 0.0
    %129 = vmatprep.subr.mxu0 0.0
    %130 = vmatpush1.msra.mxu0 0.0
    %131 = vmatprep.subr.mxu0 0.0
    %132 = vmatpush1.msra.mxu0 0.0
    %133 = vmatprep.subr.mxu0 0.0
    %134 = vmatpush1.msra.mxu0 0.0
    %135 = vmatprep.subr.mxu0 0.0
    %136 = vmatpush1.msra.mxu0 0.0
    %137 = vmatprep.subr.mxu0 0.0
    %138 = vmatpush1.msra.mxu0 0.0
    %139 = vmatprep.subr.mxu0 0.0
    %140 = vmatpush1.msra.mxu0 %v114
    %141 = vmatprep.subr.mxu0 0.0
    %142 = vmatpush1.msra.mxu0 %v113
    %143 = vmatprep.subr.mxu0 0.0
    %144 = vmatpush1.msra.mxu0 %v112
    %145 = vmatprep.subr.mxu0 0.0
    %146 = vmatpush1.msra.mxu0 %v111
    %147 = vmatprep.subr.mxu0 0.0
    %148 = vmatpush2.msra.mxu0 0.0
    %149 = vmatprep.subr.mxu0 0.0
    %150 = vmatpush2.msra.mxu0 0.0
    %151 = vmatprep.subr.mxu0 0.0
    %152 = vmatpush2.msra.mxu0 0.0
    %153 = vmatprep.subr.mxu0 0.0
    %154 = vmatpush2.msra.mxu0 0.0
    %155 = vmatprep.subr.mxu0 0.0
    %156 = vmatpush2.msra.mxu0 0.0
    %157 = vmatprep.subr.mxu0 0.0
    %158 = vmatpush2.msra.mxu0 0.0
    %159 = vmatprep.subr.mxu0 0.0
    %160 = vmatpush2.msra.mxu0 0.0
    %161 = vmatprep.subr.mxu0 0.0
    %162 = vmatpush2.msra.mxu0 0.0
    %163 = vmatprep.subr.mxu0 0.0
    %164 = vmatpush2.msra.mxu0 0.0
    %165 = vmatprep.subr.mxu0 0.0
    %166 = vmatpush2.msra.mxu0 0.0
    %167 = vmatprep.subr.mxu0 0.0
    %168 = vmatpush2.msra.mxu0 0.0
    %169 = vmatprep.subr.mxu0 0.0
    %170 = vmatpush2.msra.mxu0 0.0
    %171 = vmatprep.subr.mxu0 0.0
    %172 = vmatpush2.msra.mxu0 0.0
    %173 = vmatprep.subr.mxu0 0.0
    %174 = vmatpush2.msra.mxu0 0.0
    %175 = vmatprep.subr.mxu0 0.0
    %176 = vmatpush2.msra.mxu0 0.0
    %177 = vmatprep.subr.mxu0 0.0
    %178 = vmatpush2.msra.mxu0 0.0
    %179 = vmatprep.mubr.f32.mxu0 0.0
    %180 = vmatmul.mubr.f32.gmra.mxu0 %v38
    %v181 = vpop.f32.mrf.mxu0
    %v182 = vadd.f32 0.0, %v181
    %v183 = vpop.f32.mrf.mxu0
    %184 = vdwg.mxu0
    %v185 = vmax.f32 %v107, %v182
    %v186 = vmax.f32 %v185, -1.0
    %v187 = vmin.f32 %v186, 1.0
    %v188 = vld [vmem:[%s1] sm:$0xff]
    %v189 = vcvt.f32.s32.to.zero.pseudo %v188
    %s190 = smul.u32 0, 128
    %v191 = vlaneseq
    %v192 = vand.u32 %v191, 127
    %v193 = vstv %s190
    %v194 = vadd.s32 %v193, %v192
    %195 = vset.pattern.permute.xlu0 0
    %196 = vperm.xlu0 %195, %v189
    %v197 = vpop.permute.xlu0 %196
    %vm198 = vcmp.eq.s32.totalorder %v194, %v197
    %v199 = vmul.f32 %v187, %v187
    %v200 = vsub.f32 1.0, %v199
    %v201 = vmax.f32 %v200, 0.0
    %v202 = vrsqrt.pop %v201
    %v203 = vmul.f32 %v201, %v202
    %vm204 = vcmp.eq.f32.partialorder %v201, inf
    %v205 = vsel %vm204, %v201, %v203
    %vm206 = vcmp.eq.f32.partialorder %v201, 0.0
    %v207 = vand.u32 %v201, 2147483648
    %v208 = vsel %vm206, %v207, %v205
    %210 = vset.pattern.permute.xlu0 1
    %211 = vperm.xlu0 %210, %v188
    %v212 = vpop.permute.xlu0 %211
    %v214 = vmul.f32 %v187, %v212
    %215 = vset.pattern.permute.xlu0 2
    %216 = vperm.xlu0 %215, %v188
    %v217 = vpop.permute.xlu0 %216
    %v219 = vmul.f32 %v208, %v217
    %v220 = vsub.f32 %v214, %v219
    %v221 = vsel %vm198, %v220, %v187
    %v222 = vmul.f32 %v221, 64.0
    %v223 = vsub.f32 %v222, 64.0
    %v224 = vmul.f32 %v223, 1.442695
    %v225 = vpow.pop %v224
    %vm226 = vcmp.lt.s32.totalorder %v194, 16
    %v227 = vsel %vm226, %v225, 0.0
    %228 = vst [vmem:[#allocation5] sm:$0xff] %v227
    %p229 = scmp.eq.s32.totalorder 0, 0
    // Predicated region
    $region18: #{tpu_custom_call.1} parent=1 // pred_check
      %p230 = pneg %p229
    $region19: #{tpu_custom_call.1} parent=1 // pred_check_branch
      %232 = sbr.rel (%p230) target = $region21
    $region20: #{tpu_custom_call.1} parent=1 // pred_region
      %vm233 = vcmask 7168
      %234 = vst.msk [vmem:[%s4] sm:$0xff] %vm233, 0.0
    $region21: #{tpu_custom_call.1} parent=1 // pred_fallthru
      _
    %v235 = vld [vmem:[%s4] sm:$0xff]
    %236 = vadd.xlane.f32.xlu0 %v227
    %v237 = vpop.xlane.xlu0 %236
    %v238 = vadd.f32 %v235, %v237
    %vm239 = vcmask 7168
    %240 = vst.msk [vmem:[%s4] sm:$0xff] %vm239, %v238
    // Predicated region
    $region22: #{tpu_custom_call.1} parent=1 // pred_check
      _
    $region23: #{tpu_custom_call.1} parent=1 // pred_check_branch
      %242 = sbr.rel (0) target = $region25
    $region24: #{tpu_custom_call.1} parent=1 // pred_region
      %s244 = ssub.s32 128, 128
      %245 = vsyncadd [#allocation4], %s244
      %s247 = sshll.u32 [#allocation5], 4
      %s248 = int_to_ptr.vmem [resolvable:$true] %s247
      %250 = dma.vmem_to_hbm [thread:$0]  %s248, 128, %s3, [#allocation4]
    $region25: #{tpu_custom_call.1} parent=1 // pred_fallthru
      _
    // Predicated region
    $region26: #{tpu_custom_call.1} parent=1 // pred_check
      _
    $region27: #{tpu_custom_call.1} parent=1 // pred_check_branch
      %252 = sbr.rel (0) target = $region29
    $region28: #{tpu_custom_call.1} parent=1 // pred_region
      _
    $region29: #{tpu_custom_call.1} parent=1 // pred_fallthru
      _
    // Predicated region
    $region30: #{tpu_custom_call.1} parent=1 // pred_check
      _
    $region31: #{tpu_custom_call.1} parent=1 // pred_check_branch
      %254 = sbr.rel (0) target = $region33
    $region32: #{tpu_custom_call.1} parent=1 // pred_region
      %255 = dma.done [#allocation4], 128
    $region33: #{tpu_custom_call.1} parent=1 // pred_fallthru
      _
    // Predicated region
    $region34: #{tpu_custom_call.1} parent=1 // pred_check
      _
    $region35: #{tpu_custom_call.1} parent=1 // pred_check_branch
      %257 = sbr.rel (0) target = $region37
    $region36: #{tpu_custom_call.1} parent=1 // pred_region
      _
    $region37: #{tpu_custom_call.1} parent=1 // pred_fallthru
      _
    %258 = vsyncpa [#allocation3], 1
    %259 = vsyncpa [#allocation4], 1

</llo_original>
